<compile_context>
chip_gen: v5e
topology: v5e:2x2
jax: 0.10.0
libtpu: 0.0.40
codegen_flags: <defaults>
</compile_context>

<pallas_src>
import jax
import jax.numpy as jnp
from jax.experimental import pallas as pl
from jax.experimental.pallas import tpu as pltpu


def _lora_qkv_kernel(x_ref, w_ref, b_ref, acat_ref, bfull_ref, o_ref, xa_ref):
    # x_ref:     (tm, C)    row tile of tokens
    # w_ref:     (C, tn)    column tile of base qkv weight (stored as (in, out))
    # b_ref:     (1, tn)    column tile of qkv bias
    # acat_ref:  (C, 2r)    [Aq | Av] concatenated (small, resident)
    # bfull_ref: (2r, tn)   column tile of block-structured [Bq -> q cols ; Bv -> v cols]
    # o_ref:     (tm, tn)   output tile
    # xa_ref:    (tm, 2r)   scratch: x @ [Aq|Av], computed once per row tile
    j = pl.program_id(1)

    @pl.when(j == 0)
    def _():
        xa_ref[...] = jnp.dot(
            x_ref[...], acat_ref[...],
            preferred_element_type=jnp.float32).astype(xa_ref.dtype)

    base = jnp.dot(
        x_ref[...], w_ref[...], preferred_element_type=jnp.float32) + b_ref[...]
    lora = jnp.dot(
        xa_ref[...], bfull_ref[...], preferred_element_type=jnp.float32)

    # Single full-width lane-dense store of the whole tile.
    o_ref[...] = (base + lora).astype(o_ref.dtype)


def _choose_tn(n_total: int, tn_desired: int) -> int:
    """Largest multiple-of-128 tile <= tn_desired that divides 3C, else full width."""
    if n_total % 128 != 0 or n_total <= tn_desired:
        return n_total
    t = (tn_desired // 128) * 128
    while t > 128 and n_total % t != 0:
        t -= 128
    return t if n_total % t == 0 else n_total


def lora_qkv(x, wqkv, bqkv, aq, bq, av, bv, *, tm=256, tn=512):
    """x: (B, N, C). Weights stored as (in, out), i.e. W^T. Returns (B, N, 3*C)."""
    B, N, C = x.shape
    r = aq.shape[1]
    M = B * N
    n_total = 3 * C

    x2d = x.reshape(M, C)
    bqkv2d = bqkv.reshape(1, n_total)

    # Fuse the two rank-r "A" projections into one (C, 2r) matmul; scatter the
    # "B" matrices into a block-structured (2r, 3C) matrix so (x@A_cat)@B_full
    # adds new_q to q columns, zero to k columns and new_v to v columns.
    a_cat = jnp.concatenate([aq, av], axis=1)                      # (C, 2r)
    b_full = jnp.zeros((2 * r, n_total), dtype=bq.dtype)
    b_full = b_full.at[:r, :C].set(bq)
    b_full = b_full.at[r:, 2 * C:].set(bv)

    # --- tile selection ------------------------------------------------------
    tn_eff = _choose_tn(n_total, tn)
    tm_eff = min(tm, ((M + 7) // 8) * 8)
    tm_eff = ((tm_eff + 7) // 8) * 8
    Mp = ((M + tm_eff - 1) // tm_eff) * tm_eff
    if Mp != M:
        x2d = jnp.pad(x2d, ((0, Mp - M), (0, 0)))

    grid = (Mp // tm_eff, n_total // tn_eff)

    out2d = pl.pallas_call(
        _lora_qkv_kernel,
        out_shape=jax.ShapeDtypeStruct((Mp, n_total), x.dtype),
        grid_spec=pltpu.PrefetchScalarGridSpec(
            num_scalar_prefetch=0,
            grid=grid,
            in_specs=[
                pl.BlockSpec((tm_eff, C), lambda i, j: (i, 0)),        # x rows
                pl.BlockSpec((C, tn_eff), lambda i, j: (0, j)),        # Wqkv cols
                pl.BlockSpec((1, tn_eff), lambda i, j: (0, j)),        # bias cols
                pl.BlockSpec((C, 2 * r), lambda i, j: (0, 0)),         # [Aq|Av]
                pl.BlockSpec((2 * r, tn_eff), lambda i, j: (0, j)),    # B_full cols
            ],
            out_specs=pl.BlockSpec((tm_eff, tn_eff), lambda i, j: (i, j)),
            scratch_shapes=[pltpu.VMEM((tm_eff, 2 * r), bq.dtype)],
        ),
        compiler_params=pltpu.CompilerParams(
            dimension_semantics=("parallel", "arbitrary")),
    )(x2d, wqkv, bqkv2d, a_cat, b_full)

    if Mp != M:
        out2d = out2d[:M]
    return out2d.reshape(B, N, n_total)


def lora_qkv_reference(x, wqkv, bqkv, aq, bq, av, bv):
    B, N, C = x.shape
    qkv = jnp.einsum("bnc,cd->bnd", x, wqkv) + bqkv
    new_q = jnp.einsum("bnc,cr,rd->bnd", x, aq, bq)
    new_v = jnp.einsum("bnc,cr,rd->bnd", x, av, bv)
    qkv = qkv.at[:, :, :C].add(new_q)
    qkv = qkv.at[:, :, 2 * C:].add(new_v)
    return qkv


if __name__ == "__main__":
    # Small shapes consistent with the module: batch=2, seq=8, dim=32, rank=4.
    B, N, C, R = 2, 8, 32, 4
    key = jax.random.PRNGKey(0)
    kx, kw, kb, kaq, kbq, kav, kbv = jax.random.split(key, 7)

    x = jax.random.normal(kx, (B, N, C), dtype=jnp.float32)

    # Deterministic synthetic parameters (weights stored as (in, out), i.e. W^T).
    wqkv = jax.random.normal(kw, (C, 3 * C), dtype=jnp.float32) * 0.05
    bqkv = jax.random.normal(kb, (3 * C,), dtype=jnp.float32) * 0.05
    aq = jax.random.normal(kaq, (C, R), dtype=jnp.float32) * 0.05
    bq = jax.random.normal(kbq, (R, C), dtype=jnp.float32) * 0.05
    av = jax.random.normal(kav, (C, R), dtype=jnp.float32) * 0.05
    bv = jax.random.normal(kbv, (R, C), dtype=jnp.float32) * 0.05

    out = lora_qkv(x, wqkv, bqkv, aq, bq, av, bv)
    out = jax.block_until_ready(out)

    ref = lora_qkv_reference(x, wqkv, bqkv, aq, bq, av, bv)
    assert out.shape == (B, N, 3 * C)
    assert jnp.allclose(out, ref, atol=1e-4, rtol=1e-4)

    print("KERNEL_OK")
</pallas_src>

<mosaic_0001>
module attributes {stable_mosaic.version = 11 : i64} {
  func.func @_lora_qkv_kernel(%arg0: i32, %arg1: i32, %arg2: memref<16x32xf32, #tpu.memory_space<vmem>>, %arg3: memref<32x96xf32, #tpu.memory_space<vmem>>, %arg4: memref<1x96xf32, #tpu.memory_space<vmem>>, %arg5: memref<32x8xf32, #tpu.memory_space<vmem>>, %arg6: memref<8x96xf32, #tpu.memory_space<vmem>>, %arg7: memref<16x96xf32, #tpu.memory_space<vmem>>, %arg8: memref<16x8xf32, #tpu.memory_space<vmem>>) attributes {dimension_semantics = [#tpu.dimension_semantics<parallel>, #tpu.dimension_semantics<arbitrary>], iteration_bounds = array<i64: 1, 1>, scalar_prefetch = 0 : i64, scratch_operands = 1 : i64, tpu.core_type = #tpu.core_type<tc>, window_params = [{transform_indices = @transform_0, window_bounds = array<i64: 16, 32>}, {transform_indices = @transform_1, window_bounds = array<i64: 32, 96>}, {transform_indices = @transform_2, window_bounds = array<i64: 1, 96>}, {pipeline_mode = #tpu.pipeline_mode<synchronous>, transform_indices = @transform_3, window_bounds = array<i64: 32, 8>}, {transform_indices = @transform_4, window_bounds = array<i64: 8, 96>}, {transform_indices = @transform_5, window_bounds = array<i64: 16, 96>}]} {
    %c0_i32 = arith.constant 0 : i32
    %0 = arith.cmpi eq, %arg1, %c0_i32 : i32
    %1 = arith.extui %0 : i1 to i32
    %c0_i32_0 = arith.constant 0 : i32
    %2 = arith.cmpi ne, %1, %c0_i32_0 : i32
    scf.if %2 {
      %c0_13 = arith.constant 0 : index
      %c0_14 = arith.constant 0 : index
      %14 = vector.load %arg2[%c0_13, %c0_14] : memref<16x32xf32, #tpu.memory_space<vmem>>, vector<16x32xf32>
      %c0_15 = arith.constant 0 : index
      %c0_16 = arith.constant 0 : index
      %15 = vector.load %arg5[%c0_15, %c0_16] : memref<32x8xf32, #tpu.memory_space<vmem>>, vector<32x8xf32>
      %cst_17 = arith.constant dense<0.000000e+00> : vector<16x8xf32>
      %16 = tpu.matmul %14, %15, %cst_17 {dimension_numbers = #tpu.dot_dimension_numbers<[1], [0], [0], [1], [0, 0, 1, 1], [], []>} : vector<16x32xf32>, vector<32x8xf32>, vector<16x8xf32> -> vector<16x8xf32>
      %c0_18 = arith.constant 0 : index
      %c0_19 = arith.constant 0 : index
      %17 = vector.load %arg8[%c0_18, %c0_19] : memref<16x8xf32, #tpu.memory_space<vmem>>, vector<16x8xf32>
      tpu.vector_store %arg8[%c0_18, %c0_19], %16 {strides = array<i32>} : memref<16x8xf32, #tpu.memory_space<vmem>>, vector<16x8xf32>,
    } else {
    }
    %c0 = arith.constant 0 : index
    %c0_1 = arith.constant 0 : index
    %3 = vector.load %arg2[%c0, %c0_1] : memref<16x32xf32, #tpu.memory_space<vmem>>, vector<16x32xf32>
    %c0_2 = arith.constant 0 : index
    %c0_3 = arith.constant 0 : index
    %4 = vector.load %arg3[%c0_2, %c0_3] : memref<32x96xf32, #tpu.memory_space<vmem>>, vector<32x96xf32>
    %cst = arith.constant dense<0.000000e+00> : vector<16x96xf32>
    %5 = tpu.matmul %3, %4, %cst {dimension_numbers = #tpu.dot_dimension_numbers<[1], [0], [0], [1], [0, 0, 1, 1], [], []>} : vector<16x32xf32>, vector<32x96xf32>, vector<16x96xf32> -> vector<16x96xf32>
    %c0_4 = arith.constant 0 : index
    %c0_5 = arith.constant 0 : index
    %6 = vector.load %arg4[%c0_4, %c0_5] : memref<1x96xf32, #tpu.memory_space<vmem>>, vector<1x96xf32>
    %7 = vector.broadcast %6 : vector<1x96xf32> to vector<16x96xf32>
    %8 = arith.addf %5, %7 : vector<16x96xf32>
    %c0_6 = arith.constant 0 : index
    %c0_7 = arith.constant 0 : index
    %9 = vector.load %arg8[%c0_6, %c0_7] : memref<16x8xf32, #tpu.memory_space<vmem>>, vector<16x8xf32>
    %c0_8 = arith.constant 0 : index
    %c0_9 = arith.constant 0 : index
    %10 = vector.load %arg6[%c0_8, %c0_9] : memref<8x96xf32, #tpu.memory_space<vmem>>, vector<8x96xf32>
    %cst_10 = arith.constant dense<0.000000e+00> : vector<16x96xf32>
    %11 = tpu.matmul %9, %10, %cst_10 {dimension_numbers = #tpu.dot_dimension_numbers<[1], [0], [0], [1], [0, 0, 1, 1], [], []>} : vector<16x8xf32>, vector<8x96xf32>, vector<16x96xf32> -> vector<16x96xf32>
    %12 = arith.addf %8, %11 : vector<16x96xf32>
    %c0_11 = arith.constant 0 : index
    %c0_12 = arith.constant 0 : index
    %13 = vector.load %arg7[%c0_11, %c0_12] : memref<16x96xf32, #tpu.memory_space<vmem>>, vector<16x96xf32>
    tpu.vector_store %arg7[%c0_11, %c0_12], %12 {strides = array<i32>} : memref<16x96xf32, #tpu.memory_space<vmem>>, vector<16x96xf32>,
    return
  }
  func.func @transform_0(%arg0: i32, %arg1: i32) -> (i32, i32) {
    %c0_i32 = arith.constant 0 : i32
    %c0_i32_0 = arith.constant 0 : i32
    return %arg0, %c0_i32 : i32, i32
  }
  func.func @transform_1(%arg0: i32, %arg1: i32) -> (i32, i32) {
    %c0_i32 = arith.constant 0 : i32
    %c0_i32_0 = arith.constant 0 : i32
    return %c0_i32, %arg1 : i32, i32
  }
  func.func @transform_2(%arg0: i32, %arg1: i32) -> (i32, i32) {
    %c0_i32 = arith.constant 0 : i32
    %c0_i32_0 = arith.constant 0 : i32
    return %c0_i32, %arg1 : i32, i32
  }
  func.func @transform_3(%arg0: i32, %arg1: i32) -> (i32, i32) {
    %c0_i32 = arith.constant 0 : i32
    %c0_i32_0 = arith.constant 0 : i32
    %c0_i32_1 = arith.constant 0 : i32
    return %c0_i32, %c0_i32_0 : i32, i32
  }
  func.func @transform_4(%arg0: i32, %arg1: i32) -> (i32, i32) {
    %c0_i32 = arith.constant 0 : i32
    %c0_i32_0 = arith.constant 0 : i32
    return %c0_i32, %arg1 : i32, i32
  }
  func.func @transform_5(%arg0: i32, %arg1: i32) -> (i32, i32) {
    %c0_i32 = arith.constant 0 : i32
    return %arg0, %arg1 : i32, i32
  }
}

</mosaic_0001>

<llo_original>
// kernel: tpu_custom_call.1
$region0: #{tpu_custom_call.1}
  #allocation0 [shape = 'u32[]', space=smem, size = 0x4, offset = 0x4, fixed_abs, tag = 'smem constant byte address 0x4 - core index']
  #allocation1 [shape = 'u32[72,128]{1,0:T(1,128)}', space=vmem, size = 0x9000, scoped, tag = 'internal scratch']
  #allocation2 [shape = 'f32[16,8]{1,0:T(8,128)}', space=vmem, size = 0x2000, scoped, tag = 'scratch operand']
  %s0 = inlined_call_operand.hbm [shape: f32[16,32], index: 0, kind: input, shape index: {}]
  %s1 = inlined_call_operand.vmem [shape: f32[32,96], index: 1, kind: input, shape index: {}]
  %s2 = inlined_call_operand.vmem [shape: f32[1,96], index: 2, kind: input, shape index: {}]
  %s3 = inlined_call_operand.vmem [shape: f32[32,8], index: 3, kind: input, shape index: {}]
  %s4 = inlined_call_operand.vmem [shape: f32[8,96], index: 4, kind: input, shape index: {}]
  %s5 = inlined_call_operand.hbm [shape: f32[16,96], index: 5, kind: output, shape index: {}]
  %s6 = sld [smem:[#allocation0]]
  $region38: #{tpu_custom_call.1} parent=0
    _
  %s8 = ssub.s32 1, %s6
  %s9 = scalar_select 0, %s8, %s6
  $region1: #{tpu_custom_call.1} parent=0
    #allocation3 [shape = 'u8[8192]{0}', space=vmem, size = 0x2000, scoped, tag = 'input window, operand 0, single buffered']
    #allocation4 [shape = 's32[1]{0}', space=sflag, size = 0x4, scoped, tag = 'scoped memory for tpu_custom_call.1']
    #allocation5 [shape = 's32[1]{0}', space=sflag, size = 0x4, scoped, tag = 'scoped memory for tpu_custom_call.1']
    #allocation6 [shape = 'u8[8192]{0}', space=vmem, size = 0x2000, scoped, tag = 'output window, operand 0, single buffered']
    %10 = vsyncpa [#allocation4], 0
    %11 = vsyncpa [#allocation5], 0
    // Predicated region
    $region2: #{tpu_custom_call.1} parent=1 // pred_check
      _
    $region3: #{tpu_custom_call.1} parent=1 // pred_check_branch
      %13 = sbr.rel (0) target = $region5
    $region4: #{tpu_custom_call.1} parent=1 // pred_region
      %15 = vsyncadd [#allocation4], 0
      %s16 = sshll.u32 %s0, 4
      %s17 = int_to_ptr.hbm [resolvable:$true] %s16
      %s18 = sshll.u32 [#allocation3], 4
      %s19 = int_to_ptr.vmem [resolvable:$true] %s18
      %24 = dma.hbm_to_vmem [thread:$0]  %s17, 256, %s19, [#allocation4], 128, 128, 8
    $region5: #{tpu_custom_call.1} parent=1 // pred_fallthru
      _
    // Predicated region
    $region6: #{tpu_custom_call.1} parent=1 // pred_check
      _
    $region7: #{tpu_custom_call.1} parent=1 // pred_check_branch
      %26 = sbr.rel (0) target = $region9
    $region8: #{tpu_custom_call.1} parent=1 // pred_region
      _
    $region9: #{tpu_custom_call.1} parent=1 // pred_fallthru
      _
    // Predicated region
    $region10: #{tpu_custom_call.1} parent=1 // pred_check
      _
    $region11: #{tpu_custom_call.1} parent=1 // pred_check_branch
      %28 = sbr.rel (0) target = $region13
    $region12: #{tpu_custom_call.1} parent=1 // pred_region
      _
    $region13: #{tpu_custom_call.1} parent=1 // pred_fallthru
      _
    // Predicated region
    $region14: #{tpu_custom_call.1} parent=1 // pred_check
      _
    $region15: #{tpu_custom_call.1} parent=1 // pred_check_branch
      %30 = sbr.rel (0) target = $region17
    $region16: #{tpu_custom_call.1} parent=1 // pred_region
      _
    $region17: #{tpu_custom_call.1} parent=1 // pred_fallthru
      _
    // Predicated region
    $region18: #{tpu_custom_call.1} parent=1 // pred_check
      _
    $region19: #{tpu_custom_call.1} parent=1 // pred_check_branch
      %32 = sbr.rel (0) target = $region21
    $region20: #{tpu_custom_call.1} parent=1 // pred_region
      _
    $region21: #{tpu_custom_call.1} parent=1 // pred_fallthru
      _
    // Predicated region
    $region22: #{tpu_custom_call.1} parent=1 // pred_check
      _
    $region23: #{tpu_custom_call.1} parent=1 // pred_check_branch
      %34 = sbr.rel (0) target = $region25
    $region24: #{tpu_custom_call.1} parent=1 // pred_region
      %36 = dma.done [#allocation4], 256
    $region25: #{tpu_custom_call.1} parent=1 // pred_fallthru
      _
    %p37 = scmp.eq.s32.totalorder 0, 0
    // Predicated region
    $region26: #{tpu_custom_call.1} parent=1 // pred_check
      %p38 = pneg %p37
    $region27: #{tpu_custom_call.1} parent=1 // pred_check_branch
      %40 = sbr.rel (%p38) target = $region29
    $region28: #{tpu_custom_call.1} parent=1 // pred_region
      %v41 = vld [vmem:[#allocation3] sm:$0xff]
      %v42 = vld [vmem:[#allocation3 + $0x8] sm:$0xff]
      %v43 = vld [vmem:[%s3] sm:$0xff]
      %v44 = vld [vmem:[%s3 + $0x8] sm:$0xff]
      %v45 = vld [vmem:[%s3 + $0x10] sm:$0xff]
      %v46 = vld [vmem:[%s3 + $0x18] sm:$0xff]
      %vm47 = vcmask 261120
      %v49 = vsel %vm47, %v41, 0
      %v52 = vsel %vm47, %v42, 0
      %54 = vmatpush.msra.mxu0 0.0
      %55 = vmatpush.msra.mxu0 0.0
      %56 = vmatpush.msra.mxu0 0.0
      %57 = vmatpush.msra.mxu0 0.0
      %58 = vmatpush.msra.mxu0 0.0
      %59 = vmatpush.msra.mxu0 0.0
      %60 = vmatpush.msra.mxu0 0.0
      %61 = vmatpush.msra.mxu0 0.0
      %62 = vmatpush.msra.mxu0 0.0
      %63 = vmatpush.msra.mxu0 0.0
      %64 = vmatpush.msra.mxu0 0.0
      %65 = vmatpush.msra.mxu0 0.0
      %66 = vmatpush.msra.mxu0 %v46
      %67 = vmatpush.msra.mxu0 %v45
      %68 = vmatpush.msra.mxu0 %v44
      %69 = vmatpush.msra.mxu0 %v43
      %70 = vmatmul.f32.gmra.mxu0 %v49
      %v71 = vpop.f32.mrf.mxu0
      %v72 = vadd.f32 0.0, %v71
      %73 = vmatmul.f32.gmra.mxu0 %v52
      %v74 = vpop.f32.mrf.mxu0
      %v75 = vadd.f32 0.0, %v74
      %76 = vdwg.mxu0
      %vm77 = vcmask 64512
      %78 = vst.msk [vmem:[#allocation2] sm:$0xff] %vm77, %v72
      %79 = vst.msk [vmem:[#allocation2 + $0x8] sm:$0xff] %vm77, %v75
    $region29: #{tpu_custom_call.1} parent=1 // pred_fallthru
      _
    %v80 = vld [vmem:[#allocation3] sm:$0xff]
    %v81 = vld [vmem:[#allocation3 + $0x8] sm:$0xff]
    %v82 = vld [vmem:[%s1] sm:$0xff]
    %v83 = vld [vmem:[%s1 + $0x8] sm:$0xff]
    %v84 = vld [vmem:[%s1 + $0x10] sm:$0xff]
    %v85 = vld [vmem:[%s1 + $0x18] sm:$0xff]
    %v86 = vld [vmem:[%s2] sm:$0x1]
    %v88 = vperm.slane %v86, 0
    %vm90 = vcmask 261120
    %v92 = vsel %vm90, %v80, 0
    %v95 = vsel %vm90, %v81, 0
    %97 = vmatpush.msra.mxu0 0.0
    %98 = vmatpush.msra.mxu0 0.0
    %99 = vmatpush.msra.mxu0 0.0
    %100 = vmatpush.msra.mxu0 0.0
    %101 = vmatpush.msra.mxu0 0.0
    %102 = vmatpush.msra.mxu0 0.0
    %103 = vmatpush.msra.mxu0 0.0
    %104 = vmatpush.msra.mxu0 0.0
    %105 = vmatpush.msra.mxu0 0.0
    %106 = vmatpush.msra.mxu0 0.0
    %107 = vmatpush.msra.mxu0 0.0
    %108 = vmatpush.msra.mxu0 0.0
    %109 = vmatpush.msra.mxu0 %v85
    %110 = vmatpush.msra.mxu0 %v84
    %111 = vmatpush.msra.mxu0 %v83
    %112 = vmatpush.msra.mxu0 %v82
    %113 = vmatmul.f32.gmra.mxu0 %v92
    %v114 = vpop.f32.mrf.mxu0
    %v115 = vadd.f32 %v88, %v114
    %116 = vmatmul.f32.gmra.mxu0 %v95
    %v117 = vpop.f32.mrf.mxu0
    %v118 = vadd.f32 %v88, %v117
    %119 = vdwg.mxu0
    %v120 = vld [vmem:[#allocation2] sm:$0xff]
    %v121 = vld [vmem:[#allocation2 + $0x8] sm:$0xff]
    %v122 = vld [vmem:[%s4] sm:$0xff]
    %vm123 = vcmask 64512
    %v125 = vsel %vm123, %v120, 0
    %v128 = vsel %vm123, %v121, 0
    %130 = vmatpush.msra.mxu0 0.0
    %131 = vmatpush.msra.mxu0 0.0
    %132 = vmatpush.msra.mxu0 0.0
    %133 = vmatpush.msra.mxu0 0.0
    %134 = vmatpush.msra.mxu0 0.0
    %135 = vmatpush.msra.mxu0 0.0
    %136 = vmatpush.msra.mxu0 0.0
    %137 = vmatpush.msra.mxu0 0.0
    %138 = vmatpush.msra.mxu0 0.0
    %139 = vmatpush.msra.mxu0 0.0
    %140 = vmatpush.msra.mxu0 0.0
    %141 = vmatpush.msra.mxu0 0.0
    %142 = vmatpush.msra.mxu0 0.0
    %143 = vmatpush.msra.mxu0 0.0
    %144 = vmatpush.msra.mxu0 0.0
    %145 = vmatpush.msra.mxu0 %v122
    %146 = vmatmul.f32.gmra.mxu0 %v125
    %v147 = vpop.f32.mrf.mxu0
    %v148 = vadd.f32 0.0, %v147
    %149 = vmatmul.f32.gmra.mxu0 %v128
    %v150 = vpop.f32.mrf.mxu0
    %v151 = vadd.f32 0.0, %v150
    %152 = vdwg.mxu0
    %v153 = vadd.f32 %v115, %v148
    %v154 = vadd.f32 %v118, %v151
    %vm155 = vcmask 785408
    %156 = vst.msk [vmem:[#allocation6] sm:$0xff] %vm155, %v153
    %157 = vst.msk [vmem:[#allocation6 + $0x8] sm:$0xff] %vm155, %v154
    // Predicated region
    $region30: #{tpu_custom_call.1} parent=1 // pred_check
      _
    $region31: #{tpu_custom_call.1} parent=1 // pred_check_branch
      %159 = sbr.rel (0) target = $region33
    $region32: #{tpu_custom_call.1} parent=1 // pred_region
      %161 = vsyncadd [#allocation5], 0
      %s162 = sshll.u32 [#allocation6], 4
      %s163 = int_to_ptr.vmem [resolvable:$true] %s162
      %s164 = sshll.u32 %s5, 4
      %s165 = int_to_ptr.hbm [resolvable:$true] %s164
      %170 = dma.vmem_to_hbm [thread:$0]  %s163, 256, %s165, [#allocation5], 128, 128, 8
    $region33: #{tpu_custom_call.1} parent=1 // pred_fallthru
      _
    // Predicated region
    $region34: #{tpu_custom_call.1} parent=1 // pred_check
      _
    $region35: #{tpu_custom_call.1} parent=1 // pred_check_branch
      %172 = sbr.rel (0) target = $region37
    $region36: #{tpu_custom_call.1} parent=1 // pred_region
      %174 = dma.done [#allocation5], 256
    $region37: #{tpu_custom_call.1} parent=1 // pred_fallthru
      _
    %175 = vsyncpa [#allocation4], 1
    %176 = vsyncpa [#allocation5], 1

</llo_original>
